<compile_context>
chip_gen: v7x
topology: tpu7x:2x2x1
jax: 0.10.0
libtpu: 0.0.40
codegen_flags: <defaults>
</compile_context>

<pallas_src>
import jax
import jax.numpy as jnp
from jax.experimental import pallas as pl
from jax.experimental.pallas import tpu as pltpu

LANE = 128


def linear_kernel(x_ref, wt_ref, b_ref, o_ref):
    # x_ref: (M, Kp) f32, wt_ref: (Kp, N) f32, b_ref: (1, N) f32, o_ref: (M, N) f32
    acc = jnp.dot(x_ref[...], wt_ref[...], preferred_element_type=jnp.float32)
    o_ref[...] = (acc + b_ref[...]).astype(o_ref.dtype)


class LinearLayerPallas:
    """Pallas equivalent of the PyTorch LinearLayer (f32 weights / bias).

    Weight preparation (transpose to the MXU-native (K, N) layout and zero-pad
    the contraction dim to a lane multiple) happens ONCE here; the per-call
    forward is a single jitted pallas_call.
    """

    def __init__(self, weights, bias):
        n, k = weights.shape
        assert bias.shape == (n,)
        self.input_size = k
        self.output_size = n
        self.k_padded = ((k + LANE - 1) // LANE) * LANE

        # --- one-time weight prep, hoisted out of the per-call path ---
        wt = jnp.asarray(weights, jnp.float32).T          # (K, N)
        if self.k_padded != k:
            wt = jnp.pad(wt, ((0, self.k_padded - k), (0, 0)))
        self.wt = jax.block_until_ready(wt)               # (Kp, N), cached
        self.b2 = jax.block_until_ready(
            jnp.asarray(bias, jnp.float32).reshape(1, n))  # (1, N), cached

        self._forward = jax.jit(self._forward_impl)

    def _forward_impl(self, x, wt, b2):
        m, k = x.shape
        assert k == self.input_size
        if self.k_padded != k:
            # Tiny (~128 KiB) zero-pad of x, fused into the same jitted
            # executable; guarantees an exactly-zero contraction tail.
            x = jnp.pad(x, ((0, 0), (0, self.k_padded - k)))

        # Whole problem (x 128 KiB + W 1 MiB + out 32 KiB) is VMEM-resident, so
        # a single-shot grid-less pallas_call with full-array VMEM blocks is
        # optimal: no pipelining machinery, no double buffering, no per-step
        # grid overhead.  Output last dim N=256 is a lane-dense multiple of 128.
        return pl.pallas_call(
            linear_kernel,
            out_shape=jax.ShapeDtypeStruct((m, self.output_size), jnp.float32),
            in_specs=[
                pl.BlockSpec(memory_space=pltpu.MemorySpace.VMEM),  # x (padded)
                pl.BlockSpec(memory_space=pltpu.MemorySpace.VMEM),  # cached W^T
                pl.BlockSpec(memory_space=pltpu.MemorySpace.VMEM),  # bias row
            ],
            out_specs=pl.BlockSpec(memory_space=pltpu.MemorySpace.VMEM),
        )(x, wt, b2)

    def __call__(self, x):
        return self._forward(x, self.wt, self.b2)


if __name__ == "__main__":
    # Shapes from the PyTorch script: x = torch.randn(32, 1000),
    # LinearLayer(input_size=1000, output_size=256).
    M, K, N = 32, 1000, 256

    key = jax.random.PRNGKey(0)
    kx, kw, kb = jax.random.split(key, 3)
    x = jax.random.normal(kx, (M, K), dtype=jnp.float32)
    weights = jax.random.normal(kw, (N, K), dtype=jnp.float32)  # (output_size, input_size)
    bias = jax.random.normal(kb, (N,), dtype=jnp.float32)

    layer = LinearLayerPallas(weights, bias)

    y = layer(x)
    y = jax.block_until_ready(y)
    assert y.shape == (M, N)

    # Reference: same f32 math as the PyTorch module.
    y_ref = x @ weights.T + bias

    # Elementwise check (atol covers MXU-pass rounding differences between the
    # Pallas matmul and XLA's matmul at |y| ~ 30 magnitudes for K=1000).
    assert jnp.allclose(y, y_ref, atol=1.0, rtol=2e-2), "elementwise mismatch vs f32 reference"

    # Relative (Frobenius) error check.
    rel = jnp.linalg.norm(y - y_ref) / jnp.linalg.norm(y_ref)
    assert rel < 1e-2, f"relative error too large: {rel}"

    print("KERNEL_OK")
</pallas_src>

<mosaic_0001>
module attributes {stable_mosaic.version = 11 : i64} {
  func.func @linear_kernel(%arg0: memref<32x1024xf32, #tpu.memory_space<vmem>>, %arg1: memref<1024x256xf32, #tpu.memory_space<vmem>>, %arg2: memref<1x256xf32, #tpu.memory_space<vmem>>, %arg3: memref<32x256xf32, #tpu.memory_space<vmem>>) attributes {dimension_semantics = [], scalar_prefetch = 0 : i64, scratch_operands = 0 : i64, tpu.core_type = #tpu.core_type<tc>} {
    %c0 = arith.constant 0 : index
    %c0_0 = arith.constant 0 : index
    %0 = vector.load %arg0[%c0, %c0_0] : memref<32x1024xf32, #tpu.memory_space<vmem>>, vector<32x1024xf32>
    %c0_1 = arith.constant 0 : index
    %c0_2 = arith.constant 0 : index
    %1 = vector.load %arg1[%c0_1, %c0_2] : memref<1024x256xf32, #tpu.memory_space<vmem>>, vector<1024x256xf32>
    %cst = arith.constant dense<0.000000e+00> : vector<32x256xf32>
    %2 = tpu.matmul %0, %1, %cst {dimension_numbers = #tpu.dot_dimension_numbers<[1], [0], [0], [1], [0, 0, 1, 1], [], []>} : vector<32x1024xf32>, vector<1024x256xf32>, vector<32x256xf32> -> vector<32x256xf32>
    %c0_3 = arith.constant 0 : index
    %c0_4 = arith.constant 0 : index
    %3 = vector.load %arg2[%c0_3, %c0_4] : memref<1x256xf32, #tpu.memory_space<vmem>>, vector<1x256xf32>
    %4 = vector.broadcast %3 : vector<1x256xf32> to vector<32x256xf32>
    %5 = arith.addf %2, %4 : vector<32x256xf32>
    %c0_5 = arith.constant 0 : index
    %c0_6 = arith.constant 0 : index
    %6 = vector.load %arg3[%c0_5, %c0_6] : memref<32x256xf32, #tpu.memory_space<vmem>>, vector<32x256xf32>
    tpu.vector_store %arg3[%c0_5, %c0_6], %5 {strides = array<i32>} : memref<32x256xf32, #tpu.memory_space<vmem>>, vector<32x256xf32>,
    return
  }
}

</mosaic_0001>

<llo_original>
// kernel: _forward_impl.1
$region0: #{_forward_impl.1}
  #allocation0 [shape = 'u32[]', space=smem, size = 0x4, offset = 0x4, fixed_abs, tag = 'smem constant byte address 0x4 - core index']
  #allocation1 [shape = 'u32[144,128]{1,0:T(1,128)}', space=vmem, size = 0x12000, scoped, tag = 'internal scratch']
  %s0 = inlined_call_operand.vmem [shape: f32[32,1024], index: 0, kind: input, shape index: {}]
  %s1 = inlined_call_operand.hbm [shape: f32[1024,256], index: 1, kind: input, shape index: {}]
  %s2 = inlined_call_operand.vmem [shape: f32[1,256], index: 2, kind: input, shape index: {}]
  %s3 = inlined_call_operand.hbm [shape: f32[32,256], index: 3, kind: output, shape index: {}]
  %s4 = sld [smem:[#allocation0]]
  $region26: #{_forward_impl.1} parent=0
    _
  %s6 = ssub.s32 1, %s4
  %s7 = scalar_select 0, %s6, %s4
  $region1: #{_forward_impl.1} parent=0
    #allocation2 [shape = 'u8[1048576]{0}', space=vmem, size = 0x100000, scoped, tag = 'input window, operand 1, single buffered']
    #allocation3 [shape = 's32[1]{0}', space=sflag, size = 0x4, scoped, tag = 'scoped memory for _forward_impl.1']
    #allocation4 [shape = 's32[1]{0}', space=sflag, size = 0x4, scoped, tag = 'scoped memory for _forward_impl.1']
    #allocation5 [shape = 'u8[32768]{0}', space=vmem, size = 0x8000, scoped, tag = 'output window, operand 0, single buffered']
    %8 = vsyncpa [#allocation3], 0
    %9 = vsyncpa [#allocation4], 0
    // Predicated region
    $region2: #{_forward_impl.1} parent=1 // pred_check
      _
    $region3: #{_forward_impl.1} parent=1 // pred_check_branch
      %11 = sbr.rel (0) target = $region5
    $region4: #{_forward_impl.1} parent=1 // pred_region
      _
    $region5: #{_forward_impl.1} parent=1 // pred_fallthru
      _
    // Predicated region
    $region6: #{_forward_impl.1} parent=1 // pred_check
      _
    $region7: #{_forward_impl.1} parent=1 // pred_check_branch
      %13 = sbr.rel (0) target = $region9
    $region8: #{_forward_impl.1} parent=1 // pred_region
      %s15 = ssub.s32 32768, 32768
      %16 = vsyncadd [#allocation3], %s15
      %s17 = sshll.u32 [#allocation2], 4
      %s18 = int_to_ptr.vmem [resolvable:$true] %s17
      %23 = dma.hbm_to_vmem [thread:$0]  %s1, 32768, %s18, [#allocation3], 256, 256, 16
    $region9: #{_forward_impl.1} parent=1 // pred_fallthru
      _
    // Predicated region
    $region10: #{_forward_impl.1} parent=1 // pred_check
      _
    $region11: #{_forward_impl.1} parent=1 // pred_check_branch
      %25 = sbr.rel (0) target = $region13
    $region12: #{_forward_impl.1} parent=1 // pred_region
      _
    $region13: #{_forward_impl.1} parent=1 // pred_fallthru
      _
    // Predicated region
    $region14: #{_forward_impl.1} parent=1 // pred_check
      _
    $region15: #{_forward_impl.1} parent=1 // pred_check_branch
      %27 = sbr.rel (0) target = $region17
    $region16: #{_forward_impl.1} parent=1 // pred_region
      %28 = dma.done [#allocation3], 32768
    $region17: #{_forward_impl.1} parent=1 // pred_fallthru
      _
    %v29 = vld [vmem:[%s0] sm:$0xff]
    %v30 = vld [vmem:[%s0 + $0x8] sm:$0xff]
    %v31 = vld [vmem:[%s0 + $0x10] sm:$0xff]
    %v32 = vld [vmem:[%s0 + $0x18] sm:$0xff]
    %v33 = vld [vmem:[%s0 + $0x20] sm:$0xff]
    %v34 = vld [vmem:[%s0 + $0x28] sm:$0xff]
    %v35 = vld [vmem:[%s0 + $0x30] sm:$0xff]
    %v36 = vld [vmem:[%s0 + $0x38] sm:$0xff]
    %v37 = vld [vmem:[%s0 + $0x40] sm:$0xff]
    %v38 = vld [vmem:[%s0 + $0x48] sm:$0xff]
    %v39 = vld [vmem:[%s0 + $0x50] sm:$0xff]
    %v40 = vld [vmem:[%s0 + $0x58] sm:$0xff]
    %v41 = vld [vmem:[%s0 + $0x60] sm:$0xff]
    %v42 = vld [vmem:[%s0 + $0x68] sm:$0xff]
    %v43 = vld [vmem:[%s0 + $0x70] sm:$0xff]
    %v44 = vld [vmem:[%s0 + $0x78] sm:$0xff]
    %v45 = vld [vmem:[%s0 + $0x80] sm:$0xff]
    %v46 = vld [vmem:[%s0 + $0x88] sm:$0xff]
    %v47 = vld [vmem:[%s0 + $0x90] sm:$0xff]
    %v48 = vld [vmem:[%s0 + $0x98] sm:$0xff]
    %v49 = vld [vmem:[%s0 + $0xa0] sm:$0xff]
    %v50 = vld [vmem:[%s0 + $0xa8] sm:$0xff]
    %v51 = vld [vmem:[%s0 + $0xb0] sm:$0xff]
    %v52 = vld [vmem:[%s0 + $0xb8] sm:$0xff]
    %v53 = vld [vmem:[%s0 + $0xc0] sm:$0xff]
    %v54 = vld [vmem:[%s0 + $0xc8] sm:$0xff]
    %v55 = vld [vmem:[%s0 + $0xd0] sm:$0xff]
    %v56 = vld [vmem:[%s0 + $0xd8] sm:$0xff]
    %v57 = vld [vmem:[%s0 + $0xe0] sm:$0xff]
    %v58 = vld [vmem:[%s0 + $0xe8] sm:$0xff]
    %v59 = vld [vmem:[%s0 + $0xf0] sm:$0xff]
    %v60 = vld [vmem:[%s0 + $0xf8] sm:$0xff]
    %v61 = vld [vmem:[#allocation2] sm:$0xff]
    %v62 = vld [vmem:[#allocation2 + $0x8] sm:$0xff]
    %v63 = vld [vmem:[#allocation2 + $0x10] sm:$0xff]
    %v64 = vld [vmem:[#allocation2 + $0x18] sm:$0xff]
    %v65 = vld [vmem:[#allocation2 + $0x20] sm:$0xff]
    %v66 = vld [vmem:[#allocation2 + $0x28] sm:$0xff]
    %v67 = vld [vmem:[#allocation2 + $0x30] sm:$0xff]
    %v68 = vld [vmem:[#allocation2 + $0x38] sm:$0xff]
    %v69 = vld [vmem:[#allocation2 + $0x40] sm:$0xff]
    %v70 = vld [vmem:[#allocation2 + $0x48] sm:$0xff]
    %v71 = vld [vmem:[#allocation2 + $0x50] sm:$0xff]
    %v72 = vld [vmem:[#allocation2 + $0x58] sm:$0xff]
    %v73 = vld [vmem:[#allocation2 + $0x60] sm:$0xff]
    %v74 = vld [vmem:[#allocation2 + $0x68] sm:$0xff]
    %v75 = vld [vmem:[#allocation2 + $0x70] sm:$0xff]
    %v76 = vld [vmem:[#allocation2 + $0x78] sm:$0xff]
    %v77 = vld [vmem:[#allocation2 + $0x80] sm:$0xff]
    %v78 = vld [vmem:[#allocation2 + $0x88] sm:$0xff]
    %v79 = vld [vmem:[#allocation2 + $0x90] sm:$0xff]
    %v80 = vld [vmem:[#allocation2 + $0x98] sm:$0xff]
    %v81 = vld [vmem:[#allocation2 + $0xa0] sm:$0xff]
    %v82 = vld [vmem:[#allocation2 + $0xa8] sm:$0xff]
    %v83 = vld [vmem:[#allocation2 + $0xb0] sm:$0xff]
    %v84 = vld [vmem:[#allocation2 + $0xb8] sm:$0xff]
    %v85 = vld [vmem:[#allocation2 + $0xc0] sm:$0xff]
    %v86 = vld [vmem:[#allocation2 + $0xc8] sm:$0xff]
    %v87 = vld [vmem:[#allocation2 + $0xd0] sm:$0xff]
    %v88 = vld [vmem:[#allocation2 + $0xd8] sm:$0xff]
    %v89 = vld [vmem:[#allocation2 + $0xe0] sm:$0xff]
    %v90 = vld [vmem:[#allocation2 + $0xe8] sm:$0xff]
    %v91 = vld [vmem:[#allocation2 + $0xf0] sm:$0xff]
    %v92 = vld [vmem:[#allocation2 + $0xf8] sm:$0xff]
    %v93 = vld [vmem:[#allocation2 + $0x100] sm:$0xff]
    %v94 = vld [vmem:[#allocation2 + $0x108] sm:$0xff]
    %v95 = vld [vmem:[#allocation2 + $0x110] sm:$0xff]
    %v96 = vld [vmem:[#allocation2 + $0x118] sm:$0xff]
    %v97 = vld [vmem:[#allocation2 + $0x120] sm:$0xff]
    %v98 = vld [vmem:[#allocation2 + $0x128] sm:$0xff]
    %v99 = vld [vmem:[#allocation2 + $0x130] sm:$0xff]
    %v100 = vld [vmem:[#allocation2 + $0x138] sm:$0xff]
    %v101 = vld [vmem:[#allocation2 + $0x140] sm:$0xff]
    %v102 = vld [vmem:[#allocation2 + $0x148] sm:$0xff]
    %v103 = vld [vmem:[#allocation2 + $0x150] sm:$0xff]
    %v104 = vld [vmem:[#allocation2 + $0x158] sm:$0xff]
    %v105 = vld [vmem:[#allocation2 + $0x160] sm:$0xff]
    %v106 = vld [vmem:[#allocation2 + $0x168] sm:$0xff]
    %v107 = vld [vmem:[#allocation2 + $0x170] sm:$0xff]
    %v108 = vld [vmem:[#allocation2 + $0x178] sm:$0xff]
    %v109 = vld [vmem:[#allocation2 + $0x180] sm:$0xff]
    %v110 = vld [vmem:[#allocation2 + $0x188] sm:$0xff]
    %v111 = vld [vmem:[#allocation2 + $0x190] sm:$0xff]
    %v112 = vld [vmem:[#allocation2 + $0x198] sm:$0xff]
    %v113 = vld [vmem:[#allocation2 + $0x1a0] sm:$0xff]
    %v114 = vld [vmem:[#allocation2 + $0x1a8] sm:$0xff]
    %v115 = vld [vmem:[#allocation2 + $0x1b0] sm:$0xff]
    %v116 = vld [vmem:[#allocation2 + $0x1b8] sm:$0xff]
    %v117 = vld [vmem:[#allocation2 + $0x1c0] sm:$0xff]
    %v118 = vld [vmem:[#allocation2 + $0x1c8] sm:$0xff]
    %v119 = vld [vmem:[#allocation2 + $0x1d0] sm:$0xff]
    %v120 = vld [vmem:[#allocation2 + $0x1d8] sm:$0xff]
    %v121 = vld [vmem:[#allocation2 + $0x1e0] sm:$0xff]
    %v122 = vld [vmem:[#allocation2 + $0x1e8] sm:$0xff]
    %v123 = vld [vmem:[#allocation2 + $0x1f0] sm:$0xff]
    %v124 = vld [vmem:[#allocation2 + $0x1f8] sm:$0xff]
    %v125 = vld [vmem:[#allocation2 + $0x200] sm:$0xff]
    %v126 = vld [vmem:[#allocation2 + $0x208] sm:$0xff]
    %v127 = vld [vmem:[#allocation2 + $0x210] sm:$0xff]
    %v128 = vld [vmem:[#allocation2 + $0x218] sm:$0xff]
    %v129 = vld [vmem:[#allocation2 + $0x220] sm:$0xff]
    %v130 = vld [vmem:[#allocation2 + $0x228] sm:$0xff]
    %v131 = vld [vmem:[#allocation2 + $0x230] sm:$0xff]
    %v132 = vld [vmem:[#allocation2 + $0x238] sm:$0xff]
    %v133 = vld [vmem:[#allocation2 + $0x240] sm:$0xff]
    %v134 = vld [vmem:[#allocation2 + $0x248] sm:$0xff]
    %v135 = vld [vmem:[#allocation2 + $0x250] sm:$0xff]
    %v136 = vld [vmem:[#allocation2 + $0x258] sm:$0xff]
    %v137 = vld [vmem:[#allocation2 + $0x260] sm:$0xff]
    %v138 = vld [vmem:[#allocation2 + $0x268] sm:$0xff]
    %v139 = vld [vmem:[#allocation2 + $0x270] sm:$0xff]
    %v140 = vld [vmem:[#allocation2 + $0x278] sm:$0xff]
    %v141 = vld [vmem:[#allocation2 + $0x280] sm:$0xff]
    %v142 = vld [vmem:[#allocation2 + $0x288] sm:$0xff]
    %v143 = vld [vmem:[#allocation2 + $0x290] sm:$0xff]
    %v144 = vld [vmem:[#allocation2 + $0x298] sm:$0xff]
    %v145 = vld [vmem:[#allocation2 + $0x2a0] sm:$0xff]
    %v146 = vld [vmem:[#allocation2 + $0x2a8] sm:$0xff]
    %v147 = vld [vmem:[#allocation2 + $0x2b0] sm:$0xff]
    %v148 = vld [vmem:[#allocation2 + $0x2b8] sm:$0xff]
    %v149 = vld [vmem:[#allocation2 + $0x2c0] sm:$0xff]
    %v150 = vld [vmem:[#allocation2 + $0x2c8] sm:$0xff]
    %v151 = vld [vmem:[#allocation2 + $0x2d0] sm:$0xff]
    %v152 = vld [vmem:[#allocation2 + $0x2d8] sm:$0xff]
    %v153 = vld [vmem:[#allocation2 + $0x2e0] sm:$0xff]
    %v154 = vld [vmem:[#allocation2 + $0x2e8] sm:$0xff]
    %v155 = vld [vmem:[#allocation2 + $0x2f0] sm:$0xff]
    %v156 = vld [vmem:[#allocation2 + $0x2f8] sm:$0xff]
    %v157 = vld [vmem:[#allocation2 + $0x300] sm:$0xff]
    %v158 = vld [vmem:[#allocation2 + $0x308] sm:$0xff]
    %v159 = vld [vmem:[#allocation2 + $0x310] sm:$0xff]
    %v160 = vld [vmem:[#allocation2 + $0x318] sm:$0xff]
    %v161 = vld [vmem:[#allocation2 + $0x320] sm:$0xff]
    %v162 = vld [vmem:[#allocation2 + $0x328] sm:$0xff]
    %v163 = vld [vmem:[#allocation2 + $0x330] sm:$0xff]
    %v164 = vld [vmem:[#allocation2 + $0x338] sm:$0xff]
    %v165 = vld [vmem:[#allocation2 + $0x340] sm:$0xff]
    %v166 = vld [vmem:[#allocation2 + $0x348] sm:$0xff]
    %v167 = vld [vmem:[#allocation2 + $0x350] sm:$0xff]
    %v168 = vld [vmem:[#allocation2 + $0x358] sm:$0xff]
    %v169 = vld [vmem:[#allocation2 + $0x360] sm:$0xff]
    %v170 = vld [vmem:[#allocation2 + $0x368] sm:$0xff]
    %v171 = vld [vmem:[#allocation2 + $0x370] sm:$0xff]
    %v172 = vld [vmem:[#allocation2 + $0x378] sm:$0xff]
    %v173 = vld [vmem:[#allocation2 + $0x380] sm:$0xff]
    %v174 = vld [vmem:[#allocation2 + $0x388] sm:$0xff]
    %v175 = vld [vmem:[#allocation2 + $0x390] sm:$0xff]
    %v176 = vld [vmem:[#allocation2 + $0x398] sm:$0xff]
    %v177 = vld [vmem:[#allocation2 + $0x3a0] sm:$0xff]
    %v178 = vld [vmem:[#allocation2 + $0x3a8] sm:$0xff]
    %v179 = vld [vmem:[#allocation2 + $0x3b0] sm:$0xff]
    %v180 = vld [vmem:[#allocation2 + $0x3b8] sm:$0xff]
    %v181 = vld [vmem:[#allocation2 + $0x3c0] sm:$0xff]
    %v182 = vld [vmem:[#allocation2 + $0x3c8] sm:$0xff]
    %v183 = vld [vmem:[#allocation2 + $0x3d0] sm:$0xff]
    %v184 = vld [vmem:[#allocation2 + $0x3d8] sm:$0xff]
    %v185 = vld [vmem:[#allocation2 + $0x3e0] sm:$0xff]
    %v186 = vld [vmem:[#allocation2 + $0x3e8] sm:$0xff]
    %v187 = vld [vmem:[#allocation2 + $0x3f0] sm:$0xff]
    %v188 = vld [vmem:[#allocation2 + $0x3f8] sm:$0xff]
    %v189 = vld [vmem:[#allocation2 + $0x400] sm:$0xff]
    %v190 = vld [vmem:[#allocation2 + $0x408] sm:$0xff]
    %v191 = vld [vmem:[#allocation2 + $0x410] sm:$0xff]
    %v192 = vld [vmem:[#allocation2 + $0x418] sm:$0xff]
    %v193 = vld [vmem:[#allocation2 + $0x420] sm:$0xff]
    %v194 = vld [vmem:[#allocation2 + $0x428] sm:$0xff]
    %v195 = vld [vmem:[#allocation2 + $0x430] sm:$0xff]
    %v196 = vld [vmem:[#allocation2 + $0x438] sm:$0xff]
    %v197 = vld [vmem:[#allocation2 + $0x440] sm:$0xff]
    %v198 = vld [vmem:[#allocation2 + $0x448] sm:$0xff]
    %v199 = vld [vmem:[#allocation2 + $0x450] sm:$0xff]
    %v200 = vld [vmem:[#allocation2 + $0x458] sm:$0xff]
    %v201 = vld [vmem:[#allocation2 + $0x460] sm:$0xff]
    %v202 = vld [vmem:[#allocation2 + $0x468] sm:$0xff]
    %v203 = vld [vmem:[#allocation2 + $0x470] sm:$0xff]
    %v204 = vld [vmem:[#allocation2 + $0x478] sm:$0xff]
    %v205 = vld [vmem:[#allocation2 + $0x480] sm:$0xff]
    %v206 = vld [vmem:[#allocation2 + $0x488] sm:$0xff]
    %v207 = vld [vmem:[#allocation2 + $0x490] sm:$0xff]
    %v208 = vld [vmem:[#allocation2 + $0x498] sm:$0xff]
    %v209 = vld [vmem:[#allocation2 + $0x4a0] sm:$0xff]
    %v210 = vld [vmem:[#allocation2 + $0x4a8] sm:$0xff]
    %v211 = vld [vmem:[#allocation2 + $0x4b0] sm:$0xff]
    %v212 = vld [vmem:[#allocation2 + $0x4b8] sm:$0xff]
    %v213 = vld [vmem:[#allocation2 + $0x4c0] sm:$0xff]
    %v214 = vld [vmem:[#allocation2 + $0x4c8] sm:$0xff]
    %v215 = vld [vmem:[#allocation2 + $0x4d0] sm:$0xff]
    %v216 = vld [vmem:[#allocation2 + $0x4d8] sm:$0xff]
    %v217 = vld [vmem:[#allocation2 + $0x4e0] sm:$0xff]
    %v218 = vld [vmem:[#allocation2 + $0x4e8] sm:$0xff]
    %v219 = vld [vmem:[#allocation2 + $0x4f0] sm:$0xff]
    %v220 = vld [vmem:[#allocation2 + $0x4f8] sm:$0xff]
    %v221 = vld [vmem:[#allocation2 + $0x500] sm:$0xff]
    %v222 = vld [vmem:[#allocation2 + $0x508] sm:$0xff]
    %v223 = vld [vmem:[#allocation2 + $0x510] sm:$0xff]
    %v224 = vld [vmem:[#allocation2 + $0x518] sm:$0xff]
    %v225 = vld [vmem:[#allocation2 + $0x520] sm:$0xff]
    %v226 = vld [vmem:[#allocation2 + $0x528] sm:$0xff]
    %v227 = vld [vmem:[#allocation2 + $0x530] sm:$0xff]
    %v228 = vld [vmem:[#allocation2 + $0x538] sm:$0xff]
    %v229 = vld [vmem:[#allocation2 + $0x540] sm:$0xff]
    %v230 = vld [vmem:[#allocation2 + $0x548] sm:$0xff]
    %v231 = vld [vmem:[#allocation2 + $0x550] sm:$0xff]
    %v232 = vld [vmem:[#allocation2 + $0x558] sm:$0xff]
    %v233 = vld [vmem:[#allocation2 + $0x560] sm:$0xff]
    %v234 = vld [vmem:[#allocation2 + $0x568] sm:$0xff]
    %v235 = vld [vmem:[#allocation2 + $0x570] sm:$0xff]
    %v236 = vld [vmem:[#allocation2 + $0x578] sm:$0xff]
    %v237 = vld [vmem:[#allocation2 + $0x580] sm:$0xff]
    %v238 = vld [vmem:[#allocation2 + $0x588] sm:$0xff]
    %v239 = vld [vmem:[#allocation2 + $0x590] sm:$0xff]
    %v240 = vld [vmem:[#allocation2 + $0x598] sm:$0xff]
    %v241 = vld [vmem:[#allocation2 + $0x5a0] sm:$0xff]
    %v242 = vld [vmem:[#allocation2 + $0x5a8] sm:$0xff]
    %v243 = vld [vmem:[#allocation2 + $0x5b0] sm:$0xff]
    %v244 = vld [vmem:[#allocation2 + $0x5b8] sm:$0xff]
    %v245 = vld [vmem:[#allocation2 + $0x5c0] sm:$0xff]
    %v246 = vld [vmem:[#allocation2 + $0x5c8] sm:$0xff]
    %v247 = vld [vmem:[#allocation2 + $0x5d0] sm:$0xff]
    %v248 = vld [vmem:[#allocation2 + $0x5d8] sm:$0xff]
    %v249 = vld [vmem:[#allocation2 + $0x5e0] sm:$0xff]
    %v250 = vld [vmem:[#allocation2 + $0x5e8] sm:$0xff]
    %v251 = vld [vmem:[#allocation2 + $0x5f0] sm:$0xff]
    %v252 = vld [vmem:[#allocation2 + $0x5f8] sm:$0xff]
    %v253 = vld [vmem:[#allocation2 + $0x600] sm:$0xff]
    %v254 = vld [vmem:[#allocation2 + $0x608] sm:$0xff]
    %v255 = vld [vmem:[#allocation2 + $0x610] sm:$0xff]
    %v256 = vld [vmem:[#allocation2 + $0x618] sm:$0xff]
    %v257 = vld [vmem:[#allocation2 + $0x620] sm:$0xff]
    %v258 = vld [vmem:[#allocation2 + $0x628] sm:$0xff]
    %v259 = vld [vmem:[#allocation2 + $0x630] sm:$0xff]
    %v260 = vld [vmem:[#allocation2 + $0x638] sm:$0xff]
    %v261 = vld [vmem:[#allocation2 + $0x640] sm:$0xff]
    %v262 = vld [vmem:[#allocation2 + $0x648] sm:$0xff]
    %v263 = vld [vmem:[#allocation2 + $0x650] sm:$0xff]
    %v264 = vld [vmem:[#allocation2 + $0x658] sm:$0xff]
    %v265 = vld [vmem:[#allocation2 + $0x660] sm:$0xff]
    %v266 = vld [vmem:[#allocation2 + $0x668] sm:$0xff]
    %v267 = vld [vmem:[#allocation2 + $0x670] sm:$0xff]
    %v268 = vld [vmem:[#allocation2 + $0x678] sm:$0xff]
    %v269 = vld [vmem:[#allocation2 + $0x680] sm:$0xff]
    %v270 = vld [vmem:[#allocation2 + $0x688] sm:$0xff]
    %v271 = vld [vmem:[#allocation2 + $0x690] sm:$0xff]
    %v272 = vld [vmem:[#allocation2 + $0x698] sm:$0xff]
    %v273 = vld [vmem:[#allocation2 + $0x6a0] sm:$0xff]
    %v274 = vld [vmem:[#allocation2 + $0x6a8] sm:$0xff]
    %v275 = vld [vmem:[#allocation2 + $0x6b0] sm:$0xff]
    %v276 = vld [vmem:[#allocation2 + $0x6b8] sm:$0xff]
    %v277 = vld [vmem:[#allocation2 + $0x6c0] sm:$0xff]
    %v278 = vld [vmem:[#allocation2 + $0x6c8] sm:$0xff]
    %v279 = vld [vmem:[#allocation2 + $0x6d0] sm:$0xff]
    %v280 = vld [vmem:[#allocation2 + $0x6d8] sm:$0xff]
    %v281 = vld [vmem:[#allocation2 + $0x6e0] sm:$0xff]
    %v282 = vld [vmem:[#allocation2 + $0x6e8] sm:$0xff]
    %v283 = vld [vmem:[#allocation2 + $0x6f0] sm:$0xff]
    %v284 = vld [vmem:[#allocation2 + $0x6f8] sm:$0xff]
    %v285 = vld [vmem:[#allocation2 + $0x700] sm:$0xff]
    %v286 = vld [vmem:[#allocation2 + $0x708] sm:$0xff]
    %v287 = vld [vmem:[#allocation2 + $0x710] sm:$0xff]
    %v288 = vld [vmem:[#allocation2 + $0x718] sm:$0xff]
    %v289 = vld [vmem:[#allocation2 + $0x720] sm:$0xff]
    %v290 = vld [vmem:[#allocation2 + $0x728] sm:$0xff]
    %v291 = vld [vmem:[#allocation2 + $0x730] sm:$0xff]
    %v292 = vld [vmem:[#allocation2 + $0x738] sm:$0xff]
    %v293 = vld [vmem:[#allocation2 + $0x740] sm:$0xff]
    %v294 = vld [vmem:[#allocation2 + $0x748] sm:$0xff]
    %v295 = vld [vmem:[#allocation2 + $0x750] sm:$0xff]
    %v296 = vld [vmem:[#allocation2 + $0x758] sm:$0xff]
    %v297 = vld [vmem:[#allocation2 + $0x760] sm:$0xff]
    %v298 = vld [vmem:[#allocation2 + $0x768] sm:$0xff]
    %v299 = vld [vmem:[#allocation2 + $0x770] sm:$0xff]
    %v300 = vld [vmem:[#allocation2 + $0x778] sm:$0xff]
    %v301 = vld [vmem:[#allocation2 + $0x780] sm:$0xff]
    %v302 = vld [vmem:[#allocation2 + $0x788] sm:$0xff]
    %v303 = vld [vmem:[#allocation2 + $0x790] sm:$0xff]
    %v304 = vld [vmem:[#allocation2 + $0x798] sm:$0xff]
    %v305 = vld [vmem:[#allocation2 + $0x7a0] sm:$0xff]
    %v306 = vld [vmem:[#allocation2 + $0x7a8] sm:$0xff]
    %v307 = vld [vmem:[#allocation2 + $0x7b0] sm:$0xff]
    %v308 = vld [vmem:[#allocation2 + $0x7b8] sm:$0xff]
    %v309 = vld [vmem:[#allocation2 + $0x7c0] sm:$0xff]
    %v310 = vld [vmem:[#allocation2 + $0x7c8] sm:$0xff]
    %v311 = vld [vmem:[#allocation2 + $0x7d0] sm:$0xff]
    %v312 = vld [vmem:[#allocation2 + $0x7d8] sm:$0xff]
    %v313 = vld [vmem:[#allocation2 + $0x7e0] sm:$0xff]
    %v314 = vld [vmem:[#allocation2 + $0x7e8] sm:$0xff]
    %v315 = vld [vmem:[#allocation2 + $0x7f0] sm:$0xff]
    %v316 = vld [vmem:[#allocation2 + $0x7f8] sm:$0xff]
    %v317 = vld [vmem:[%s2] sm:$0x3]
    %v319 = vlaneseq
    %v320 = vshrl.u32 %v319, 7
    %v321 = vsub.s32 0, %v320
    %v322 = vrot.slane %v317, %v321
    %v323 = vlaneseq
    %v324 = vshrl.u32 %v323, 7
    %v325 = vsub.s32 1, %v324
    %v326 = vrot.slane %v317, %v325
    %329 = vmatprep.subr.mxu0 %v62
    %330 = vmatpush1.msra.mxu0 %v61
    %331 = vmatprep.subr.mxu0 %v64
    %332 = vmatpush1.msra.mxu0 %v63
    %333 = vmatprep.subr.mxu0 %v66
    %334 = vmatpush1.msra.mxu0 %v65
    %335 = vmatprep.subr.mxu0 %v68
    %336 = vmatpush1.msra.mxu0 %v67
    %337 = vmatprep.subr.mxu0 %v70
    %338 = vmatpush1.msra.mxu0 %v69
    %339 = vmatprep.subr.mxu0 %v72
    %340 = vmatpush1.msra.mxu0 %v71
    %341 = vmatprep.subr.mxu0 %v74
    %342 = vmatpush1.msra.mxu0 %v73
    %343 = vmatprep.subr.mxu0 %v76
    %344 = vmatpush1.msra.mxu0 %v75
    %345 = vmatprep.subr.mxu0 %v78
    %346 = vmatpush1.msra.mxu0 %v77
    %347 = vmatprep.subr.mxu0 %v80
    %348 = vmatpush1.msra.mxu0 %v79
    %349 = vmatprep.subr.mxu0 %v82
    %350 = vmatpush1.msra.mxu0 %v81
    %351 = vmatprep.subr.mxu0 %v84
    %352 = vmatpush1.msra.mxu0 %v83
    %353 = vmatprep.subr.mxu0 %v86
    %354 = vmatpush1.msra.mxu0 %v85
    %355 = vmatprep.subr.mxu0 %v88
    %356 = vmatpush1.msra.mxu0 %v87
    %357 = vmatprep.subr.mxu0 %v90
    %358 = vmatpush1.msra.mxu0 %v89
    %359 = vmatprep.subr.mxu0 %v92
    %360 = vmatpush1.msra.mxu0 %v91
    %361 = vmatprep.subr.mxu0 %v94
    %362 = vmatpush1.msra.mxu0 %v93
    %363 = vmatprep.subr.mxu0 %v96
    %364 = vmatpush1.msra.mxu0 %v95
    %365 = vmatprep.subr.mxu0 %v98
    %366 = vmatpush1.msra.mxu0 %v97
    %367 = vmatprep.subr.mxu0 %v100
    %368 = vmatpush1.msra.mxu0 %v99
    %369 = vmatprep.subr.mxu0 %v102
    %370 = vmatpush1.msra.mxu0 %v101
    %371 = vmatprep.subr.mxu0 %v104
    %372 = vmatpush1.msra.mxu0 %v103
    %373 = vmatprep.subr.mxu0 %v106
    %374 = vmatpush1.msra.mxu0 %v105
    %375 = vmatprep.subr.mxu0 %v108
    %376 = vmatpush1.msra.mxu0 %v107
    %377 = vmatprep.subr.mxu0 %v110
    %378 = vmatpush1.msra.mxu0 %v109
    %379 = vmatprep.subr.mxu0 %v112
    %380 = vmatpush1.msra.mxu0 %v111
    %381 = vmatprep.subr.mxu0 %v114
    %382 = vmatpush1.msra.mxu0 %v113
    %383 = vmatprep.subr.mxu0 %v116
    %384 = vmatpush1.msra.mxu0 %v115
    %385 = vmatprep.subr.mxu0 %v118
    %386 = vmatpush1.msra.mxu0 %v117
    %387 = vmatprep.subr.mxu0 %v120
    %388 = vmatpush1.msra.mxu0 %v119
    %389 = vmatprep.subr.mxu0 %v122
    %390 = vmatpush1.msra.mxu0 %v121
    %391 = vmatprep.subr.mxu0 %v124
    %392 = vmatpush1.msra.mxu0 %v123
    %393 = vmatprep.mubr.f32.mxu0 %v30
    %394 = vmatmul.mubr.f32.gmra.mrb[0].mxu0 %v29
    %v395 = vpop.f32.mrb[0].mxu0
    %v396 = vadd.f32 %v322, %v395
    %v397 = vpop.f32.mrb[0].mxu0
    %v398 = vadd.f32 %v326, %v397
    %399 = vmatprep.mubr.f32.mxu0 %v38
    %400 = vmatmul.mubr.f32.gmra.mrb[0].mxu0 %v37
    %v401 = vpop.f32.mrb[0].mxu0
    %v402 = vadd.f32 %v322, %v401
    %v403 = vpop.f32.mrb[0].mxu0
    %v404 = vadd.f32 %v326, %v403
    %405 = vmatprep.mubr.f32.mxu0 %v46
    %406 = vmatmul.mubr.f32.gmra.mrb[0].mxu0 %v45
    %v407 = vpop.f32.mrb[0].mxu0
    %v408 = vadd.f32 %v322, %v407
    %v409 = vpop.f32.mrb[0].mxu0
    %v410 = vadd.f32 %v326, %v409
    %411 = vmatprep.mubr.f32.mxu0 %v54
    %412 = vmatmul.mubr.f32.gmra.mrb[0].mxu0 %v53
    %v413 = vpop.f32.mrb[0].mxu0
    %v414 = vadd.f32 %v322, %v413
    %v415 = vpop.f32.mrb[0].mxu0
    %v416 = vadd.f32 %v326, %v415
    %417 = vdwg.mxu0
    %418 = vmatprep.subr.mxu0 %v126
    %419 = vmatpush1.msra.mxu0 %v125
    %420 = vmatprep.subr.mxu0 %v128
    %421 = vmatpush1.msra.mxu0 %v127
    %422 = vmatprep.subr.mxu0 %v130
    %423 = vmatpush1.msra.mxu0 %v129
    %424 = vmatprep.subr.mxu0 %v132
    %425 = vmatpush1.msra.mxu0 %v131
    %426 = vmatprep.subr.mxu0 %v134
    %427 = vmatpush1.msra.mxu0 %v133
    %428 = vmatprep.subr.mxu0 %v136
    %429 = vmatpush1.msra.mxu0 %v135
    %430 = vmatprep.subr.mxu0 %v138
    %431 = vmatpush1.msra.mxu0 %v137
    %432 = vmatprep.subr.mxu0 %v140
    %433 = vmatpush1.msra.mxu0 %v139
    %434 = vmatprep.subr.mxu0 %v142
    %435 = vmatpush1.msra.mxu0 %v141
    %436 = vmatprep.subr.mxu0 %v144
    %437 = vmatpush1.msra.mxu0 %v143
    %438 = vmatprep.subr.mxu0 %v146
    %439 = vmatpush1.msra.mxu0 %v145
    %440 = vmatprep.subr.mxu0 %v148
    %441 = vmatpush1.msra.mxu0 %v147
    %442 = vmatprep.subr.mxu0 %v150
    %443 = vmatpush1.msra.mxu0 %v149
    %444 = vmatprep.subr.mxu0 %v152
    %445 = vmatpush1.msra.mxu0 %v151
    %446 = vmatprep.subr.mxu0 %v154
    %447 = vmatpush1.msra.mxu0 %v153
    %448 = vmatprep.subr.mxu0 %v156
    %449 = vmatpush1.msra.mxu0 %v155
    %450 = vmatprep.subr.mxu0 %v158
    %451 = vmatpush1.msra.mxu0 %v157
    %452 = vmatprep.subr.mxu0 %v160
    %453 = vmatpush1.msra.mxu0 %v159
    %454 = vmatprep.subr.mxu0 %v162
    %455 = vmatpush1.msra.mxu0 %v161
    %456 = vmatprep.subr.mxu0 %v164
    %457 = vmatpush1.msra.mxu0 %v163
    %458 = vmatprep.subr.mxu0 %v166
    %459 = vmatpush1.msra.mxu0 %v165
    %460 = vmatprep.subr.mxu0 %v168
    %461 = vmatpush1.msra.mxu0 %v167
    %462 = vmatprep.subr.mxu0 %v170
    %463 = vmatpush1.msra.mxu0 %v169
    %464 = vmatprep.subr.mxu0 %v172
    %465 = vmatpush1.msra.mxu0 %v171
    %466 = vmatprep.subr.mxu0 %v174
    %467 = vmatpush1.msra.mxu0 %v173
    %468 = vmatprep.subr.mxu0 %v176
    %469 = vmatpush1.msra.mxu0 %v175
    %470 = vmatprep.subr.mxu0 %v178
    %471 = vmatpush1.msra.mxu0 %v177
    %472 = vmatprep.subr.mxu0 %v180
    %473 = vmatpush1.msra.mxu0 %v179
    %474 = vmatprep.subr.mxu0 %v182
    %475 = vmatpush1.msra.mxu0 %v181
    %476 = vmatprep.subr.mxu0 %v184
    %477 = vmatpush1.msra.mxu0 %v183
    %478 = vmatprep.subr.mxu0 %v186
    %479 = vmatpush1.msra.mxu0 %v185
    %480 = vmatprep.subr.mxu0 %v188
    %481 = vmatpush1.msra.mxu0 %v187
    %482 = vmatprep.mubr.f32.mxu0 %v32
    %483 = vmatmul.mubr.f32.gmra.mrb[0].mxu0 %v31
    %v484 = vpop.f32.mrb[0].mxu0
    %v485 = vadd.f32 %v396, %v484
    %v486 = vpop.f32.mrb[0].mxu0
    %v487 = vadd.f32 %v398, %v486
    %488 = vmatprep.mubr.f32.mxu0 %v40
    %489 = vmatmul.mubr.f32.gmra.mrb[0].mxu0 %v39
    %v490 = vpop.f32.mrb[0].mxu0
    %v491 = vadd.f32 %v402, %v490
    %v492 = vpop.f32.mrb[0].mxu0
    %v493 = vadd.f32 %v404, %v492
    %494 = vmatprep.mubr.f32.mxu0 %v48
    %495 = vmatmul.mubr.f32.gmra.mrb[0].mxu0 %v47
    %v496 = vpop.f32.mrb[0].mxu0
    %v497 = vadd.f32 %v408, %v496
    %v498 = vpop.f32.mrb[0].mxu0
    %v499 = vadd.f32 %v410, %v498
    %500 = vmatprep.mubr.f32.mxu0 %v56
    %501 = vmatmul.mubr.f32.gmra.mrb[0].mxu0 %v55
    %v502 = vpop.f32.mrb[0].mxu0
    %v503 = vadd.f32 %v414, %v502
    %v504 = vpop.f32.mrb[0].mxu0
    %v505 = vadd.f32 %v416, %v504
    %506 = vdwg.mxu0
    %507 = vmatprep.subr.mxu0 %v190
    %508 = vmatpush1.msra.mxu0 %v189
    %509 = vmatprep.subr.mxu0 %v192
    %510 = vmatpush1.msra.mxu0 %v191
    %511 = vmatprep.subr.mxu0 %v194
    %512 = vmatpush1.msra.mxu0 %v193
    %513 = vmatprep.subr.mxu0 %v196
    %514 = vmatpush1.msra.mxu0 %v195
    %515 = vmatprep.subr.mxu0 %v198
    %516 = vmatpush1.msra.mxu0 %v197
    %517 = vmatprep.subr.mxu0 %v200
    %518 = vmatpush1.msra.mxu0 %v199
    %519 = vmatprep.subr.mxu0 %v202
    %520 = vmatpush1.msra.mxu0 %v201
    %521 = vmatprep.subr.mxu0 %v204
    %522 = vmatpush1.msra.mxu0 %v203
    %523 = vmatprep.subr.mxu0 %v206
    %524 = vmatpush1.msra.mxu0 %v205
    %525 = vmatprep.subr.mxu0 %v208
    %526 = vmatpush1.msra.mxu0 %v207
    %527 = vmatprep.subr.mxu0 %v210
    %528 = vmatpush1.msra.mxu0 %v209
    %529 = vmatprep.subr.mxu0 %v212
    %530 = vmatpush1.msra.mxu0 %v211
    %531 = vmatprep.subr.mxu0 %v214
    %532 = vmatpush1.msra.mxu0 %v213
    %533 = vmatprep.subr.mxu0 %v216
    %534 = vmatpush1.msra.mxu0 %v215
    %535 = vmatprep.subr.mxu0 %v218
    %536 = vmatpush1.msra.mxu0 %v217
    %537 = vmatprep.subr.mxu0 %v220
    %538 = vmatpush1.msra.mxu0 %v219
    %539 = vmatprep.subr.mxu0 %v222
    %540 = vmatpush1.msra.mxu0 %v221
    %541 = vmatprep.subr.mxu0 %v224
    %542 = vmatpush1.msra.mxu0 %v223
    %543 = vmatprep.subr.mxu0 %v226
    %544 = vmatpush1.msra.mxu0 %v225
    %545 = vmatprep.subr.mxu0 %v228
    %546 = vmatpush1.msra.mxu0 %v227
    %547 = vmatprep.subr.mxu0 %v230
    %548 = vmatpush1.msra.mxu0 %v229
    %549 = vmatprep.subr.mxu0 %v232
    %550 = vmatpush1.msra.mxu0 %v231
    %551 = vmatprep.subr.mxu0 %v234
    %552 = vmatpush1.msra.mxu0 %v233
    %553 = vmatprep.subr.mxu0 %v236
    %554 = vmatpush1.msra.mxu0 %v235
    %555 = vmatprep.subr.mxu0 %v238
    %556 = vmatpush1.msra.mxu0 %v237
    %557 = vmatprep.subr.mxu0 %v240
    %558 = vmatpush1.msra.mxu0 %v239
    %559 = vmatprep.subr.mxu0 %v242
    %560 = vmatpush1.msra.mxu0 %v241
    %561 = vmatprep.subr.mxu0 %v244
    %562 = vmatpush1.msra.mxu0 %v243
    %563 = vmatprep.subr.mxu0 %v246
    %564 = vmatpush1.msra.mxu0 %v245
    %565 = vmatprep.subr.mxu0 %v248
    %566 = vmatpush1.msra.mxu0 %v247
    %567 = vmatprep.subr.mxu0 %v250
    %568 = vmatpush1.msra.mxu0 %v249
    %569 = vmatprep.subr.mxu0 %v252
    %570 = vmatpush1.msra.mxu0 %v251
    %571 = vmatprep.mubr.f32.mxu0 %v34
    %572 = vmatmul.mubr.f32.gmra.mrb[0].mxu0 %v33
    %v573 = vpop.f32.mrb[0].mxu0
    %v574 = vadd.f32 %v485, %v573
    %v575 = vpop.f32.mrb[0].mxu0
    %v576 = vadd.f32 %v487, %v575
    %577 = vmatprep.mubr.f32.mxu0 %v42
    %578 = vmatmul.mubr.f32.gmra.mrb[0].mxu0 %v41
    %v579 = vpop.f32.mrb[0].mxu0
    %v580 = vadd.f32 %v491, %v579
    %v581 = vpop.f32.mrb[0].mxu0
    %v582 = vadd.f32 %v493, %v581
    %583 = vmatprep.mubr.f32.mxu0 %v50
    %584 = vmatmul.mubr.f32.gmra.mrb[0].mxu0 %v49
    %v585 = vpop.f32.mrb[0].mxu0
    %v586 = vadd.f32 %v497, %v585
    %v587 = vpop.f32.mrb[0].mxu0
    %v588 = vadd.f32 %v499, %v587
    %589 = vmatprep.mubr.f32.mxu0 %v58
    %590 = vmatmul.mubr.f32.gmra.mrb[0].mxu0 %v57
    %v591 = vpop.f32.mrb[0].mxu0
    %v592 = vadd.f32 %v503, %v591
    %v593 = vpop.f32.mrb[0].mxu0
    %v594 = vadd.f32 %v505, %v593
    %595 = vdwg.mxu0
    %596 = vmatprep.subr.mxu0 %v254
    %597 = vmatpush1.msra.mxu0 %v253
    %598 = vmatprep.subr.mxu0 %v256
    %599 = vmatpush1.msra.mxu0 %v255
    %600 = vmatprep.subr.mxu0 %v258
    %601 = vmatpush1.msra.mxu0 %v257
    %602 = vmatprep.subr.mxu0 %v260
    %603 = vmatpush1.msra.mxu0 %v259
    %604 = vmatprep.subr.mxu0 %v262
    %605 = vmatpush1.msra.mxu0 %v261
    %606 = vmatprep.subr.mxu0 %v264
    %607 = vmatpush1.msra.mxu0 %v263
    %608 = vmatprep.subr.mxu0 %v266
    %609 = vmatpush1.msra.mxu0 %v265
    %610 = vmatprep.subr.mxu0 %v268
    %611 = vmatpush1.msra.mxu0 %v267
    %612 = vmatprep.subr.mxu0 %v270
    %613 = vmatpush1.msra.mxu0 %v269
    %614 = vmatprep.subr.mxu0 %v272
    %615 = vmatpush1.msra.mxu0 %v271
    %616 = vmatprep.subr.mxu0 %v274
    %617 = vmatpush1.msra.mxu0 %v273
    %618 = vmatprep.subr.mxu0 %v276
    %619 = vmatpush1.msra.mxu0 %v275
    %620 = vmatprep.subr.mxu0 %v278
    %621 = vmatpush1.msra.mxu0 %v277
    %622 = vmatprep.subr.mxu0 %v280
    %623 = vmatpush1.msra.mxu0 %v279
    %624 = vmatprep.subr.mxu0 %v282
    %625 = vmatpush1.msra.mxu0 %v281
    %626 = vmatprep.subr.mxu0 %v284
    %627 = vmatpush1.msra.mxu0 %v283
    %628 = vmatprep.subr.mxu0 %v286
    %629 = vmatpush1.msra.mxu0 %v285
    %630 = vmatprep.subr.mxu0 %v288
    %631 = vmatpush1.msra.mxu0 %v287
    %632 = vmatprep.subr.mxu0 %v290
    %633 = vmatpush1.msra.mxu0 %v289
    %634 = vmatprep.subr.mxu0 %v292
    %635 = vmatpush1.msra.mxu0 %v291
    %636 = vmatprep.subr.mxu0 %v294
    %637 = vmatpush1.msra.mxu0 %v293
    %638 = vmatprep.subr.mxu0 %v296
    %639 = vmatpush1.msra.mxu0 %v295
    %640 = vmatprep.subr.mxu0 %v298
    %641 = vmatpush1.msra.mxu0 %v297
    %642 = vmatprep.subr.mxu0 %v300
    %643 = vmatpush1.msra.mxu0 %v299
    %644 = vmatprep.subr.mxu0 %v302
    %645 = vmatpush1.msra.mxu0 %v301
    %646 = vmatprep.subr.mxu0 %v304
    %647 = vmatpush1.msra.mxu0 %v303
    %648 = vmatprep.subr.mxu0 %v306
    %649 = vmatpush1.msra.mxu0 %v305
    %650 = vmatprep.subr.mxu0 %v308
    %651 = vmatpush1.msra.mxu0 %v307
    %652 = vmatprep.subr.mxu0 %v310
    %653 = vmatpush1.msra.mxu0 %v309
    %654 = vmatprep.subr.mxu0 %v312
    %655 = vmatpush1.msra.mxu0 %v311
    %656 = vmatprep.subr.mxu0 %v314
    %657 = vmatpush1.msra.mxu0 %v313
    %658 = vmatprep.subr.mxu0 %v316
    %659 = vmatpush1.msra.mxu0 %v315
    %660 = vmatprep.mubr.f32.mxu0 %v36
    %661 = vmatmul.mubr.f32.gmra.mrb[0].mxu0 %v35
    %v662 = vpop.f32.mrb[0].mxu0
    %v663 = vadd.f32 %v574, %v662
    %v664 = vpop.f32.mrb[0].mxu0
    %v665 = vadd.f32 %v576, %v664
    %666 = vmatprep.mubr.f32.mxu0 %v44
    %667 = vmatmul.mubr.f32.gmra.mrb[0].mxu0 %v43
    %v668 = vpop.f32.mrb[0].mxu0
    %v669 = vadd.f32 %v580, %v668
    %v670 = vpop.f32.mrb[0].mxu0
    %v671 = vadd.f32 %v582, %v670
    %672 = vmatprep.mubr.f32.mxu0 %v52
    %673 = vmatmul.mubr.f32.gmra.mrb[0].mxu0 %v51
    %v674 = vpop.f32.mrb[0].mxu0
    %v675 = vadd.f32 %v586, %v674
    %v676 = vpop.f32.mrb[0].mxu0
    %v677 = vadd.f32 %v588, %v676
    %678 = vmatprep.mubr.f32.mxu0 %v60
    %679 = vmatmul.mubr.f32.gmra.mrb[0].mxu0 %v59
    %v680 = vpop.f32.mrb[0].mxu0
    %v681 = vadd.f32 %v592, %v680
    %v682 = vpop.f32.mrb[0].mxu0
    %v683 = vadd.f32 %v594, %v682
    %684 = vdwg.mxu0
    %685 = vst [vmem:[#allocation5] sm:$0xff] %v663
    %686 = vst [vmem:[#allocation5 + $0x8] sm:$0xff] %v665
    %687 = vst [vmem:[#allocation5 + $0x10] sm:$0xff] %v669
    %688 = vst [vmem:[#allocation5 + $0x18] sm:$0xff] %v671
    %689 = vst [vmem:[#allocation5 + $0x20] sm:$0xff] %v675
    %690 = vst [vmem:[#allocation5 + $0x28] sm:$0xff] %v677
    %691 = vst [vmem:[#allocation5 + $0x30] sm:$0xff] %v681
    %692 = vst [vmem:[#allocation5 + $0x38] sm:$0xff] %v683
    // Predicated region
    $region18: #{_forward_impl.1} parent=1 // pred_check
      _
    $region19: #{_forward_impl.1} parent=1 // pred_check_branch
      %694 = sbr.rel (0) target = $region21
    $region20: #{_forward_impl.1} parent=1 // pred_region
      %s696 = ssub.s32 1024, 1024
      %697 = vsyncadd [#allocation4], %s696
      %s698 = sshll.u32 [#allocation5], 4
      %s699 = int_to_ptr.vmem [resolvable:$true] %s698
      %704 = dma.vmem_to_hbm [thread:$0]  %s699, 1024, %s3, [#allocation4], 256, 256, 16
    $region21: #{_forward_impl.1} parent=1 // pred_fallthru
      _
    // Predicated region
    $region22: #{_forward_impl.1} parent=1 // pred_check
      _
    $region23: #{_forward_impl.1} parent=1 // pred_check_branch
      %706 = sbr.rel (0) target = $region25
    $region24: #{_forward_impl.1} parent=1 // pred_region
      %707 = dma.done [#allocation4], 1024
    $region25: #{_forward_impl.1} parent=1 // pred_fallthru
      _
    %708 = vsyncpa [#allocation3], 1
    %709 = vsyncpa [#allocation4], 1

</llo_original>
